<compile_context>
chip_gen: v7x
topology: tpu7x:2x2x1
jax: 0.10.0
libtpu: 0.0.40
codegen_flags: <defaults>
</compile_context>

<pallas_src>
import math
import random
import functools

import jax
import jax.numpy as jnp
from jax.experimental import pallas as pl
from jax.experimental.pallas import tpu as pltpu


# ----------------------------- Pallas kernel -------------------------------

def bowvae_kernel(x_ref, we_ref, be_ref, we2_ref, be2_ref,
                  wml_ref, bml_ref, wd_ref, bd_ref, wo_ref, bo_ref,
                  eps_ref,
                  mean_ref, logvar_ref, vecs_ref, stats_ref,
                  *, n_sample, n_lat):
    f32 = jnp.float32
    bf16 = jnp.bfloat16

    x = x_ref[...]                                   # (B, V) f32 counts
    B = x.shape[0]
    V = x.shape[1]
    xb = x.astype(bf16)

    # ------------------------------ encoder ------------------------------
    h1 = jnp.tanh(jnp.dot(xb, we_ref[...], preferred_element_type=f32)
                  + be_ref[...])                     # (B, H) f32
    h2 = (jnp.dot(h1.astype(bf16), we2_ref[...], preferred_element_type=f32)
          + be2_ref[...])                            # (B, H) f32
    # fused [mean | logvar] projection: one MXU push on a 2L-wide output
    ml = (jnp.dot(h2.astype(bf16), wml_ref[...], preferred_element_type=f32)
          + bml_ref[...])                            # (B, 2L) f32
    mean = ml[:, :n_lat]                             # (B, L)
    logvar = ml[:, n_lat:]                           # (B, L)
    mean_ref[...] = mean
    logvar_ref[...] = logvar

    kld = -0.5 * jnp.sum(1.0 + logvar - mean * mean - jnp.exp(logvar),
                         axis=1, keepdims=True)      # (B, 1)
    norm = jnp.sqrt(jnp.sum(mean * mean, axis=1, keepdims=True))  # (B, 1)

    # ------------------- reparameterized samples (all S) ------------------
    std = jnp.exp(0.5 * logvar)                      # (B, L) f32
    vs = mean[None, :, :] + eps_ref[...] * std[None, :, :]   # (S, B, L) f32
    vecs_ref[...] = vs                               # single stacked store

    # ---------------- decoder: one batched matmul over S*B ----------------
    vflat = vs.reshape(n_sample * B, n_lat)
    h = jnp.tanh(jnp.dot(vflat.astype(bf16), wd_ref[...],
                         preferred_element_type=f32) + bd_ref[...])   # (S*B, H)
    logits = (jnp.dot(h.astype(bf16), wo_ref[...], preferred_element_type=f32)
              + bo_ref[...])                         # (S*B, V) f32
    logits3 = logits.reshape(n_sample, B, V)

    # log-softmax normalizer per (sample, row); no (B,V) logp accumulator:
    #   sum_v x*(logits - lse) = sum_v x*logits - lse * rowsum(x)
    m = jnp.max(logits3, axis=2, keepdims=True)                        # (S,B,1)
    lse = m + jnp.log(jnp.sum(jnp.exp(logits3 - m), axis=2, keepdims=True))
    xsum = jnp.sum(x, axis=1, keepdims=True)                           # (B,1)
    xlog = jnp.sum(logits3 * x[None, :, :], axis=2, keepdims=True)     # (S,B,1)
    recon_sb = xlog - lse * xsum[None, :, :]                           # (S,B,1)
    recon = -(1.0 / n_sample) * jnp.sum(recon_sb, axis=0)              # (B,1)

    # lane-dense stats slab: col 0 = kld, col 1 = norm, col 2 = recon_loss
    col = jax.lax.broadcasted_iota(jnp.int32, (B, 128), 1)
    stats = jnp.where(col == 0, kld,
                      jnp.where(col == 1, norm,
                                jnp.where(col == 2, recon,
                                          jnp.zeros((B, 128), f32))))
    stats_ref[...] = stats


# ------------------------------ host wrappers ------------------------------

def _full_spec(shape):
    n = len(shape)
    return pl.BlockSpec(shape, lambda i, _n=n: (0,) * _n)


def bow_vae_fused(x, eps, p, n_sample):
    B, V = x.shape
    L = p["W_ml"].shape[1] // 2
    args = (x, p["W_enc"], p["b_enc"], p["W_enc2"], p["b_enc2"],
            p["W_ml"], p["b_ml"], p["W_dec"], p["b_dec"],
            p["W_out"], p["b_out"], eps)
    out_shapes = (
        jax.ShapeDtypeStruct((B, L), jnp.float32),            # mean
        jax.ShapeDtypeStruct((B, L), jnp.float32),            # logvar
        jax.ShapeDtypeStruct((n_sample, B, L), jnp.float32),  # vecs
        jax.ShapeDtypeStruct((B, 128), jnp.float32),          # stats: kld|norm|recon
    )
    kern = functools.partial(bowvae_kernel, n_sample=n_sample, n_lat=L)
    return pl.pallas_call(
        kern,
        out_shape=out_shapes,
        grid=(1,),
        in_specs=[_full_spec(a.shape) for a in args],
        out_specs=[_full_spec(s.shape) for s in out_shapes],
        compiler_params=pltpu.CompilerParams(
            dimension_semantics=("arbitrary",)),
    )(*args)


def check_dispersion(vecs, num_sam=10):
    """Mirrors BowVAE.check_dispersion: 10 random cosine sims among sample-0
    vectors. Index choice is host-side random (as in the PyTorch code); the
    10 cosines are computed in one gathered batched op instead of 10 tiny
    dispatches."""
    random.seed(0)  # deterministic index choice
    B = vecs.shape[1]
    idx1, idx2 = [], []
    for _ in range(num_sam):
        i1 = random.randint(0, B - 1)
        while True:
            i2 = random.randint(0, B - 1)
            if i1 != i2:
                break
        idx1.append(i1)
        idx2.append(i2)
    a = vecs[0][jnp.asarray(idx1)]                   # (10, L)
    b = vecs[0][jnp.asarray(idx2)]                   # (10, L)
    dots = jnp.sum(a * b, axis=1)
    na = jnp.sqrt(jnp.sum(a * a, axis=1))
    nb = jnp.sqrt(jnp.sum(b * b, axis=1))
    return jnp.mean(dots / (na * nb))


def bow_vae_forward(x, params, n_sample, eps):
    B = x.shape[0]
    mean, logvar, vecs, stats = bow_vae_fused(x, eps, params, n_sample)
    kld = stats[:, 0]
    norm = stats[:, 1]
    recon_loss = stats[:, 2]

    aux_loss = jnp.zeros((B,), jnp.float32)   # Gauss dist has no 'redundant_norm'
    tup = {
        "mean": mean,
        "logvar": logvar,
        "norm": norm,                          # assumption: Gauss reports ||mean||
        "avg_cos": check_dispersion(vecs),
        "avg_norm": jnp.mean(norm),
    }
    return recon_loss, kld, aux_loss, tup, vecs


# ------------------------------- param init --------------------------------

def linear_params(key, fan_in, fan_out):
    """PyTorch nn.Linear default init: U(-1/sqrt(fan_in), 1/sqrt(fan_in)).
    Weights are stored in bf16 (matmul operands); biases stay f32 (added to
    the f32 MXU accumulation)."""
    bound = 1.0 / math.sqrt(fan_in)
    kw, kb = jax.random.split(key)
    W = jax.random.uniform(kw, (fan_in, fan_out), jnp.float32, -bound, bound)
    b = jax.random.uniform(kb, (1, fan_out), jnp.float32, -bound, bound)
    return W.astype(jnp.bfloat16), b


def init_params(key, vocab_size, n_hidden, n_lat):
    ks = jax.random.split(key, 6)
    p = {}
    p["W_enc"], p["b_enc"] = linear_params(ks[0], vocab_size, n_hidden)
    p["W_enc2"], p["b_enc2"] = linear_params(ks[1], n_hidden, n_hidden)
    W_mean, b_mean = linear_params(ks[2], n_hidden, n_lat)      # Gauss.func_mean
    W_logvar, b_logvar = linear_params(ks[3], n_hidden, n_lat)  # Gauss.func_logvar
    # column-wise fusion of the two latent projections -> single (H, 2L) matmul
    p["W_ml"] = jnp.concatenate([W_mean, W_logvar], axis=1)
    p["b_ml"] = jnp.concatenate([b_mean, b_logvar], axis=1)
    p["W_dec"], p["b_dec"] = linear_params(ks[4], n_lat, n_hidden)
    p["W_out"], p["b_out"] = linear_params(ks[5], n_hidden, vocab_size)
    return p


# ---------------------------------- main ------------------------------------

if __name__ == "__main__":
    VOCAB = 256
    N_HIDDEN = 64
    N_LAT = 32
    N_SAMPLE = 3
    BATCH = 8

    root = jax.random.PRNGKey(0)
    k_param, k_x, k_eps = jax.random.split(root, 3)

    params = init_params(k_param, VOCAB, N_HIDDEN, N_LAT)

    # bag-of-words counts (non-negative integers, exactly representable in bf16)
    x = jnp.floor(jax.random.uniform(k_x, (BATCH, VOCAB), jnp.float32) * 4.0)
    # reparameterization noise for all samples
    eps = jax.random.normal(k_eps, (N_SAMPLE, BATCH, N_LAT), jnp.float32)

    recon_loss, kld, aux_loss, tup, vecs = bow_vae_forward(x, params, N_SAMPLE, eps)

    jax.block_until_ready((recon_loss, kld, aux_loss, tup["avg_cos"],
                           tup["avg_norm"], vecs))

    assert recon_loss.shape == (BATCH,)
    assert kld.shape == (BATCH,)
    assert aux_loss.shape == (BATCH,)
    assert vecs.shape == (N_SAMPLE, BATCH, N_LAT)
    assert bool(jnp.all(jnp.isfinite(recon_loss)))
    assert bool(jnp.all(jnp.isfinite(kld)))

    print("KERNEL_OK")
</pallas_src>

<mosaic_0001>
module attributes {stable_mosaic.version = 11 : i64} {
  func.func @bowvae_kernel(%arg0: i32, %arg1: memref<8x256xf32, #tpu.memory_space<vmem>>, %arg2: memref<256x64xbf16, #tpu.memory_space<vmem>>, %arg3: memref<1x64xf32, #tpu.memory_space<vmem>>, %arg4: memref<64x64xbf16, #tpu.memory_space<vmem>>, %arg5: memref<1x64xf32, #tpu.memory_space<vmem>>, %arg6: memref<64x64xbf16, #tpu.memory_space<vmem>>, %arg7: memref<1x64xf32, #tpu.memory_space<vmem>>, %arg8: memref<32x64xbf16, #tpu.memory_space<vmem>>, %arg9: memref<1x64xf32, #tpu.memory_space<vmem>>, %arg10: memref<64x256xbf16, #tpu.memory_space<vmem>>, %arg11: memref<1x256xf32, #tpu.memory_space<vmem>>, %arg12: memref<3x8x32xf32, #tpu.memory_space<vmem>>, %arg13: memref<8x32xf32, #tpu.memory_space<vmem>>, %arg14: memref<8x32xf32, #tpu.memory_space<vmem>>, %arg15: memref<3x8x32xf32, #tpu.memory_space<vmem>>, %arg16: memref<8x128xf32, #tpu.memory_space<vmem>>) attributes {dimension_semantics = [#tpu.dimension_semantics<arbitrary>], iteration_bounds = array<i64: 1>, scalar_prefetch = 0 : i64, scratch_operands = 0 : i64, tpu.core_type = #tpu.core_type<tc>, window_params = [{pipeline_mode = #tpu.pipeline_mode<synchronous>, transform_indices = @transform_0, window_bounds = array<i64: 8, 256>}, {pipeline_mode = #tpu.pipeline_mode<synchronous>, transform_indices = @transform_1, window_bounds = array<i64: 256, 64>}, {pipeline_mode = #tpu.pipeline_mode<synchronous>, transform_indices = @transform_2, window_bounds = array<i64: 1, 64>}, {pipeline_mode = #tpu.pipeline_mode<synchronous>, transform_indices = @transform_3, window_bounds = array<i64: 64, 64>}, {pipeline_mode = #tpu.pipeline_mode<synchronous>, transform_indices = @transform_4, window_bounds = array<i64: 1, 64>}, {pipeline_mode = #tpu.pipeline_mode<synchronous>, transform_indices = @transform_5, window_bounds = array<i64: 64, 64>}, {pipeline_mode = #tpu.pipeline_mode<synchronous>, transform_indices = @transform_6, window_bounds = array<i64: 1, 64>}, {pipeline_mode = #tpu.pipeline_mode<synchronous>, transform_indices = @transform_7, window_bounds = array<i64: 32, 64>}, {pipeline_mode = #tpu.pipeline_mode<synchronous>, transform_indices = @transform_8, window_bounds = array<i64: 1, 64>}, {pipeline_mode = #tpu.pipeline_mode<synchronous>, transform_indices = @transform_9, window_bounds = array<i64: 64, 256>}, {pipeline_mode = #tpu.pipeline_mode<synchronous>, transform_indices = @transform_10, window_bounds = array<i64: 1, 256>}, {pipeline_mode = #tpu.pipeline_mode<synchronous>, transform_indices = @transform_11, window_bounds = array<i64: 3, 8, 32>}, {pipeline_mode = #tpu.pipeline_mode<synchronous>, transform_indices = @transform_12, window_bounds = array<i64: 8, 32>}, {pipeline_mode = #tpu.pipeline_mode<synchronous>, transform_indices = @transform_13, window_bounds = array<i64: 8, 32>}, {pipeline_mode = #tpu.pipeline_mode<synchronous>, transform_indices = @transform_14, window_bounds = array<i64: 3, 8, 32>}, {pipeline_mode = #tpu.pipeline_mode<synchronous>, transform_indices = @transform_15, window_bounds = array<i64: 8, 128>}]} {
    %c0 = arith.constant 0 : index
    %c0_0 = arith.constant 0 : index
    %0 = vector.load %arg1[%c0, %c0_0] : memref<8x256xf32, #tpu.memory_space<vmem>>, vector<8x256xf32>
    %1 = arith.truncf %0 : vector<8x256xf32> to vector<8x256xbf16>
    %c0_1 = arith.constant 0 : index
    %c0_2 = arith.constant 0 : index
    %2 = vector.load %arg2[%c0_1, %c0_2] : memref<256x64xbf16, #tpu.memory_space<vmem>>, vector<256x64xbf16>
    %cst = arith.constant dense<0.000000e+00> : vector<8x64xf32>
    %3 = tpu.matmul %1, %2, %cst {dimension_numbers = #tpu.dot_dimension_numbers<[1], [0], [0], [1], [0, 0, 1, 1], [], []>} : vector<8x256xbf16>, vector<256x64xbf16>, vector<8x64xf32> -> vector<8x64xf32>
    %c0_3 = arith.constant 0 : index
    %c0_4 = arith.constant 0 : index
    %4 = vector.load %arg3[%c0_3, %c0_4] : memref<1x64xf32, #tpu.memory_space<vmem>>, vector<1x64xf32>
    %5 = vector.broadcast %4 : vector<1x64xf32> to vector<8x64xf32>
    %6 = arith.addf %3, %5 : vector<8x64xf32>
    %7 = math.tanh %6 : vector<8x64xf32>
    %8 = arith.truncf %7 : vector<8x64xf32> to vector<8x64xbf16>
    %c0_5 = arith.constant 0 : index
    %c0_6 = arith.constant 0 : index
    %9 = vector.load %arg4[%c0_5, %c0_6] : memref<64x64xbf16, #tpu.memory_space<vmem>>, vector<64x64xbf16>
    %cst_7 = arith.constant dense<0.000000e+00> : vector<8x64xf32>
    %10 = tpu.matmul %8, %9, %cst_7 {dimension_numbers = #tpu.dot_dimension_numbers<[1], [0], [0], [1], [0, 0, 1, 1], [], []>} : vector<8x64xbf16>, vector<64x64xbf16>, vector<8x64xf32> -> vector<8x64xf32>
    %c0_8 = arith.constant 0 : index
    %c0_9 = arith.constant 0 : index
    %11 = vector.load %arg5[%c0_8, %c0_9] : memref<1x64xf32, #tpu.memory_space<vmem>>, vector<1x64xf32>
    %12 = vector.broadcast %11 : vector<1x64xf32> to vector<8x64xf32>
    %13 = arith.addf %10, %12 : vector<8x64xf32>
    %14 = arith.truncf %13 : vector<8x64xf32> to vector<8x64xbf16>
    %c0_10 = arith.constant 0 : index
    %c0_11 = arith.constant 0 : index
    %15 = vector.load %arg6[%c0_10, %c0_11] : memref<64x64xbf16, #tpu.memory_space<vmem>>, vector<64x64xbf16>
    %cst_12 = arith.constant dense<0.000000e+00> : vector<8x64xf32>
    %16 = tpu.matmul %14, %15, %cst_12 {dimension_numbers = #tpu.dot_dimension_numbers<[1], [0], [0], [1], [0, 0, 1, 1], [], []>} : vector<8x64xbf16>, vector<64x64xbf16>, vector<8x64xf32> -> vector<8x64xf32>
    %c0_13 = arith.constant 0 : index
    %c0_14 = arith.constant 0 : index
    %17 = vector.load %arg7[%c0_13, %c0_14] : memref<1x64xf32, #tpu.memory_space<vmem>>, vector<1x64xf32>
    %18 = vector.broadcast %17 : vector<1x64xf32> to vector<8x64xf32>
    %19 = arith.addf %16, %18 : vector<8x64xf32>
    %20 = vector.extract_strided_slice %19 {offsets = [0, 0], sizes = [8, 32], strides = [1, 1]} : vector<8x64xf32> to vector<8x32xf32>
    %21 = vector.extract_strided_slice %19 {offsets = [0, 32], sizes = [8, 32], strides = [1, 1]} : vector<8x64xf32> to vector<8x32xf32>
    %c0_15 = arith.constant 0 : index
    %c0_16 = arith.constant 0 : index
    %22 = vector.load %arg13[%c0_15, %c0_16] : memref<8x32xf32, #tpu.memory_space<vmem>>, vector<8x32xf32>
    tpu.vector_store %arg13[%c0_15, %c0_16], %20 {strides = array<i32>} : memref<8x32xf32, #tpu.memory_space<vmem>>, vector<8x32xf32>,
    %c0_17 = arith.constant 0 : index
    %c0_18 = arith.constant 0 : index
    %23 = vector.load %arg14[%c0_17, %c0_18] : memref<8x32xf32, #tpu.memory_space<vmem>>, vector<8x32xf32>
    tpu.vector_store %arg14[%c0_17, %c0_18], %21 {strides = array<i32>} : memref<8x32xf32, #tpu.memory_space<vmem>>, vector<8x32xf32>,
    %cst_19 = arith.constant 1.000000e+00 : f32
    %24 = vector.broadcast %cst_19 : f32 to vector<8x32xf32>
    %25 = arith.addf %24, %21 : vector<8x32xf32>
    %26 = arith.mulf %20, %20 : vector<8x32xf32>
    %27 = arith.subf %25, %26 : vector<8x32xf32>
    %28 = math.exp %21 : vector<8x32xf32>
    %29 = arith.subf %27, %28 : vector<8x32xf32>
    %cst_20 = arith.constant dense<0.000000e+00> : vector<8xf32>
    %30 = vector.multi_reduction <add>, %29, %cst_20 [1] : vector<8x32xf32> to vector<8xf32>
    %31 = vector.shape_cast %30 : vector<8xf32> to vector<8x1xf32>
    %cst_21 = arith.constant -5.000000e-01 : f32
    %32 = vector.broadcast %cst_21 : f32 to vector<8x1xf32>
    %33 = arith.mulf %32, %31 : vector<8x1xf32>
    %34 = arith.mulf %20, %20 : vector<8x32xf32>
    %cst_22 = arith.constant dense<0.000000e+00> : vector<8xf32>
    %35 = vector.multi_reduction <add>, %34, %cst_22 [1] : vector<8x32xf32> to vector<8xf32>
    %36 = vector.shape_cast %35 : vector<8xf32> to vector<8x1xf32>
    %37 = math.sqrt %36 : vector<8x1xf32>
    %cst_23 = arith.constant 5.000000e-01 : f32
    %38 = vector.broadcast %cst_23 : f32 to vector<8x32xf32>
    %39 = arith.mulf %38, %21 : vector<8x32xf32>
    %40 = math.exp %39 : vector<8x32xf32>
    %41 = vector.shape_cast %20 : vector<8x32xf32> to vector<1x8x32xf32>
    %c0_24 = arith.constant 0 : index
    %c0_25 = arith.constant 0 : index
    %c0_26 = arith.constant 0 : index
    %42 = vector.load %arg12[%c0_24, %c0_25, %c0_26] : memref<3x8x32xf32, #tpu.memory_space<vmem>>, vector<3x8x32xf32>
    %43 = vector.shape_cast %40 : vector<8x32xf32> to vector<1x8x32xf32>
    %44 = vector.broadcast %43 : vector<1x8x32xf32> to vector<3x8x32xf32>
    %45 = arith.mulf %42, %44 : vector<3x8x32xf32>
    %46 = vector.broadcast %41 : vector<1x8x32xf32> to vector<3x8x32xf32>
    %47 = arith.addf %46, %45 : vector<3x8x32xf32>
    %c0_27 = arith.constant 0 : index
    %c0_28 = arith.constant 0 : index
    %c0_29 = arith.constant 0 : index
    %48 = vector.load %arg15[%c0_27, %c0_28, %c0_29] : memref<3x8x32xf32, #tpu.memory_space<vmem>>, vector<3x8x32xf32>
    tpu.vector_store %arg15[%c0_27, %c0_28, %c0_29], %47 {strides = array<i32>} : memref<3x8x32xf32, #tpu.memory_space<vmem>>, vector<3x8x32xf32>,
    %49 = vector.shape_cast %47 : vector<3x8x32xf32> to vector<24x32xf32>
    %50 = arith.truncf %49 : vector<24x32xf32> to vector<24x32xbf16>
    %c0_30 = arith.constant 0 : index
    %c0_31 = arith.constant 0 : index
    %51 = vector.load %arg8[%c0_30, %c0_31] : memref<32x64xbf16, #tpu.memory_space<vmem>>, vector<32x64xbf16>
    %cst_32 = arith.constant dense<0.000000e+00> : vector<24x64xf32>
    %52 = tpu.matmul %50, %51, %cst_32 {dimension_numbers = #tpu.dot_dimension_numbers<[1], [0], [0], [1], [0, 0, 1, 1], [], []>} : vector<24x32xbf16>, vector<32x64xbf16>, vector<24x64xf32> -> vector<24x64xf32>
    %c0_33 = arith.constant 0 : index
    %c0_34 = arith.constant 0 : index
    %53 = vector.load %arg9[%c0_33, %c0_34] : memref<1x64xf32, #tpu.memory_space<vmem>>, vector<1x64xf32>
    %54 = vector.broadcast %53 : vector<1x64xf32> to vector<24x64xf32>
    %55 = arith.addf %52, %54 : vector<24x64xf32>
    %56 = math.tanh %55 : vector<24x64xf32>
    %57 = arith.truncf %56 : vector<24x64xf32> to vector<24x64xbf16>
    %c0_35 = arith.constant 0 : index
    %c0_36 = arith.constant 0 : index
    %58 = vector.load %arg10[%c0_35, %c0_36] : memref<64x256xbf16, #tpu.memory_space<vmem>>, vector<64x256xbf16>
    %cst_37 = arith.constant dense<0.000000e+00> : vector<24x256xf32>
    %59 = tpu.matmul %57, %58, %cst_37 {dimension_numbers = #tpu.dot_dimension_numbers<[1], [0], [0], [1], [0, 0, 1, 1], [], []>} : vector<24x64xbf16>, vector<64x256xbf16>, vector<24x256xf32> -> vector<24x256xf32>
    %c0_38 = arith.constant 0 : index
    %c0_39 = arith.constant 0 : index
    %60 = vector.load %arg11[%c0_38, %c0_39] : memref<1x256xf32, #tpu.memory_space<vmem>>, vector<1x256xf32>
    %61 = vector.broadcast %60 : vector<1x256xf32> to vector<24x256xf32>
    %62 = arith.addf %59, %61 : vector<24x256xf32>
    %63 = vector.shape_cast %62 : vector<24x256xf32> to vector<3x8x256xf32>
    %cst_40 = arith.constant dense<0xFF800000> : vector<3x8xf32>
    %64 = vector.multi_reduction <maximumf>, %63, %cst_40 [2] : vector<3x8x256xf32> to vector<3x8xf32>
    %65 = vector.shape_cast %64 : vector<3x8xf32> to vector<3x8x1xf32>
    %66 = vector.broadcast %65 : vector<3x8x1xf32> to vector<3x8x256xf32>
    %67 = arith.subf %63, %66 : vector<3x8x256xf32>
    %68 = math.exp %67 : vector<3x8x256xf32>
    %cst_41 = arith.constant dense<0.000000e+00> : vector<3x8xf32>
    %69 = vector.multi_reduction <add>, %68, %cst_41 [2] : vector<3x8x256xf32> to vector<3x8xf32>
    %70 = vector.shape_cast %69 : vector<3x8xf32> to vector<3x8x1xf32>
    %71 = math.log %70 : vector<3x8x1xf32>
    %72 = arith.addf %65, %71 : vector<3x8x1xf32>
    %cst_42 = arith.constant dense<0.000000e+00> : vector<8xf32>
    %73 = vector.multi_reduction <add>, %0, %cst_42 [1] : vector<8x256xf32> to vector<8xf32>
    %74 = vector.shape_cast %73 : vector<8xf32> to vector<8x1xf32>
    %75 = vector.shape_cast %0 : vector<8x256xf32> to vector<1x8x256xf32>
    %76 = vector.broadcast %75 : vector<1x8x256xf32> to vector<3x8x256xf32>
    %77 = arith.mulf %63, %76 : vector<3x8x256xf32>
    %cst_43 = arith.constant dense<0.000000e+00> : vector<3x8xf32>
    %78 = vector.multi_reduction <add>, %77, %cst_43 [2] : vector<3x8x256xf32> to vector<3x8xf32>
    %79 = vector.shape_cast %78 : vector<3x8xf32> to vector<3x8x1xf32>
    %80 = vector.shape_cast %74 : vector<8x1xf32> to vector<1x8x1xf32>
    %81 = vector.broadcast %80 : vector<1x8x1xf32> to vector<3x8x1xf32>
    %82 = arith.mulf %72, %81 : vector<3x8x1xf32>
    %83 = arith.subf %79, %82 : vector<3x8x1xf32>
    %cst_44 = arith.constant dense<0.000000e+00> : vector<8x1xf32>
    %84 = vector.multi_reduction <add>, %83, %cst_44 [0] : vector<3x8x1xf32> to vector<8x1xf32>
    %cst_45 = arith.constant -0.333333343 : f32
    %85 = vector.broadcast %cst_45 : f32 to vector<8x1xf32>
    %86 = arith.mulf %85, %84 : vector<8x1xf32>
    %87 = tpu.iota {dimensions = array<i32: 1>} : vector<8x128xi32>
    %c0_i32 = arith.constant 0 : i32
    %88 = vector.broadcast %c0_i32 : i32 to vector<8x128xi32>
    %89 = arith.cmpi eq, %87, %88 : vector<8x128xi32>
    %c1_i32 = arith.constant 1 : i32
    %90 = vector.broadcast %c1_i32 : i32 to vector<8x128xi32>
    %91 = arith.cmpi eq, %87, %90 : vector<8x128xi32>
    %c2_i32 = arith.constant 2 : i32
    %92 = vector.broadcast %c2_i32 : i32 to vector<8x128xi32>
    %93 = arith.cmpi eq, %87, %92 : vector<8x128xi32>
    %cst_46 = arith.constant 0.000000e+00 : f32
    %94 = vector.broadcast %cst_46 : f32 to vector<8x128xf32>
    %95 = vector.shape_cast %86 : vector<8x1xf32> to vector<8x1xf32>
    %96 = vector.broadcast %95 : vector<8x1xf32> to vector<8x128xf32>
    %97 = arith.select %93, %96, %94 : vector<8x128xi1>, vector<8x128xf32>
    %98 = vector.shape_cast %37 : vector<8x1xf32> to vector<8x1xf32>
    %99 = vector.broadcast %98 : vector<8x1xf32> to vector<8x128xf32>
    %100 = arith.select %91, %99, %97 : vector<8x128xi1>, vector<8x128xf32>
    %101 = vector.shape_cast %33 : vector<8x1xf32> to vector<8x1xf32>
    %102 = vector.broadcast %101 : vector<8x1xf32> to vector<8x128xf32>
    %103 = arith.select %89, %102, %100 : vector<8x128xi1>, vector<8x128xf32>
    %c0_47 = arith.constant 0 : index
    %c0_48 = arith.constant 0 : index
    %104 = vector.load %arg16[%c0_47, %c0_48] : memref<8x128xf32, #tpu.memory_space<vmem>>, vector<8x128xf32>
    tpu.vector_store %arg16[%c0_47, %c0_48], %103 {strides = array<i32>} : memref<8x128xf32, #tpu.memory_space<vmem>>, vector<8x128xf32>,
    return
  }
  func.func @transform_0(%arg0: i32) -> (i32, i32) {
    %c0_i32 = arith.constant 0 : i32
    %c0_i32_0 = arith.constant 0 : i32
    %c0_i32_1 = arith.constant 0 : i32
    return %c0_i32, %c0_i32_0 : i32, i32
  }
  func.func @transform_1(%arg0: i32) -> (i32, i32) {
    %c0_i32 = arith.constant 0 : i32
    %c0_i32_0 = arith.constant 0 : i32
    %c0_i32_1 = arith.constant 0 : i32
    return %c0_i32, %c0_i32_0 : i32, i32
  }
  func.func @transform_2(%arg0: i32) -> (i32, i32) {
    %c0_i32 = arith.constant 0 : i32
    %c0_i32_0 = arith.constant 0 : i32
    %c0_i32_1 = arith.constant 0 : i32
    return %c0_i32, %c0_i32_0 : i32, i32
  }
  func.func @transform_3(%arg0: i32) -> (i32, i32) {
    %c0_i32 = arith.constant 0 : i32
    %c0_i32_0 = arith.constant 0 : i32
    %c0_i32_1 = arith.constant 0 : i32
    return %c0_i32, %c0_i32_0 : i32, i32
  }
  func.func @transform_4(%arg0: i32) -> (i32, i32) {
    %c0_i32 = arith.constant 0 : i32
    %c0_i32_0 = arith.constant 0 : i32
    %c0_i32_1 = arith.constant 0 : i32
    return %c0_i32, %c0_i32_0 : i32, i32
  }
  func.func @transform_5(%arg0: i32) -> (i32, i32) {
    %c0_i32 = arith.constant 0 : i32
    %c0_i32_0 = arith.constant 0 : i32
    %c0_i32_1 = arith.constant 0 : i32
    return %c0_i32, %c0_i32_0 : i32, i32
  }
  func.func @transform_6(%arg0: i32) -> (i32, i32) {
    %c0_i32 = arith.constant 0 : i32
    %c0_i32_0 = arith.constant 0 : i32
    %c0_i32_1 = arith.constant 0 : i32
    return %c0_i32, %c0_i32_0 : i32, i32
  }
  func.func @transform_7(%arg0: i32) -> (i32, i32) {
    %c0_i32 = arith.constant 0 : i32
    %c0_i32_0 = arith.constant 0 : i32
    %c0_i32_1 = arith.constant 0 : i32
    return %c0_i32, %c0_i32_0 : i32, i32
  }
  func.func @transform_8(%arg0: i32) -> (i32, i32) {
    %c0_i32 = arith.constant 0 : i32
    %c0_i32_0 = arith.constant 0 : i32
    %c0_i32_1 = arith.constant 0 : i32
    return %c0_i32, %c0_i32_0 : i32, i32
  }
  func.func @transform_9(%arg0: i32) -> (i32, i32) {
    %c0_i32 = arith.constant 0 : i32
    %c0_i32_0 = arith.constant 0 : i32
    %c0_i32_1 = arith.constant 0 : i32
    return %c0_i32, %c0_i32_0 : i32, i32
  }
  func.func @transform_10(%arg0: i32) -> (i32, i32) {
    %c0_i32 = arith.constant 0 : i32
    %c0_i32_0 = arith.constant 0 : i32
    %c0_i32_1 = arith.constant 0 : i32
    return %c0_i32, %c0_i32_0 : i32, i32
  }
  func.func @transform_11(%arg0: i32) -> (i32, i32, i32) {
    %c0_i32 = arith.constant 0 : i32
    %c0_i32_0 = arith.constant 0 : i32
    %c0_i32_1 = arith.constant 0 : i32
    %c0_i32_2 = arith.constant 0 : i32
    return %c0_i32, %c0_i32_0, %c0_i32_1 : i32, i32, i32
  }
  func.func @transform_12(%arg0: i32) -> (i32, i32) {
    %c0_i32 = arith.constant 0 : i32
    %c0_i32_0 = arith.constant 0 : i32
    %c0_i32_1 = arith.constant 0 : i32
    return %c0_i32, %c0_i32_0 : i32, i32
  }
  func.func @transform_13(%arg0: i32) -> (i32, i32) {
    %c0_i32 = arith.constant 0 : i32
    %c0_i32_0 = arith.constant 0 : i32
    %c0_i32_1 = arith.constant 0 : i32
    return %c0_i32, %c0_i32_0 : i32, i32
  }
  func.func @transform_14(%arg0: i32) -> (i32, i32, i32) {
    %c0_i32 = arith.constant 0 : i32
    %c0_i32_0 = arith.constant 0 : i32
    %c0_i32_1 = arith.constant 0 : i32
    %c0_i32_2 = arith.constant 0 : i32
    return %c0_i32, %c0_i32_0, %c0_i32_1 : i32, i32, i32
  }
  func.func @transform_15(%arg0: i32) -> (i32, i32) {
    %c0_i32 = arith.constant 0 : i32
    %c0_i32_0 = arith.constant 0 : i32
    %c0_i32_1 = arith.constant 0 : i32
    return %c0_i32, %c0_i32_0 : i32, i32
  }
}

</mosaic_0001>

<llo_original>
// kernel: tpu_custom_call.1
$region0: #{tpu_custom_call.1}
  #allocation0 [shape = 'u32[]', space=smem, size = 0x4, offset = 0x4, fixed_abs, tag = 'smem constant byte address 0x4 - core index']
  #allocation1 [shape = 'u32[144,128]{1,0:T(1,128)}', space=vmem, size = 0x12000, scoped, tag = 'internal scratch']
  %s0 = inlined_call_operand.vmem [shape: f32[8,256], index: 0, kind: input, shape index: {}]
  %s1 = inlined_call_operand.vmem [shape: bf16[256,64], index: 1, kind: input, shape index: {}]
  %s2 = inlined_call_operand.vmem [shape: f32[1,64], index: 2, kind: input, shape index: {}]
  %s3 = inlined_call_operand.vmem [shape: bf16[64,64], index: 3, kind: input, shape index: {}]
  %s4 = inlined_call_operand.vmem [shape: f32[1,64], index: 4, kind: input, shape index: {}]
  %s5 = inlined_call_operand.vmem [shape: bf16[64,64], index: 5, kind: input, shape index: {}]
  %s6 = inlined_call_operand.vmem [shape: f32[1,64], index: 6, kind: input, shape index: {}]
  %s7 = inlined_call_operand.vmem [shape: bf16[32,64], index: 7, kind: input, shape index: {}]
  %s8 = inlined_call_operand.vmem [shape: f32[1,64], index: 8, kind: input, shape index: {}]
  %s9 = inlined_call_operand.vmem [shape: bf16[64,256], index: 9, kind: input, shape index: {}]
  %s10 = inlined_call_operand.vmem [shape: f32[1,256], index: 10, kind: input, shape index: {}]
  %s11 = inlined_call_operand.vmem [shape: f32[3,8,32], index: 11, kind: input, shape index: {}]
  %s12 = inlined_call_operand.hbm [shape: f32[8,32], index: 12, kind: output, shape index: {0}]
  %s13 = inlined_call_operand.hbm [shape: f32[8,32], index: 13, kind: output, shape index: {1}]
  %s14 = inlined_call_operand.hbm [shape: f32[3,8,32], index: 14, kind: output, shape index: {2}]
  %s15 = inlined_call_operand.hbm [shape: f32[8,128], index: 15, kind: output, shape index: {3}]
  %16 = xla_tuple %s12, %s13, %s14, %s15
  %s17 = sld [smem:[#allocation0]]
  $region82: #{tpu_custom_call.1} parent=0
    _
  %s19 = ssub.s32 1, %s17
  %s20 = scalar_select 0, %s19, %s17
  $region1: #{tpu_custom_call.1} parent=0
    #allocation2 [shape = 'u8[4096]{0}', space=vmem, size = 0x1000, scoped, tag = 'output window, operand 0, single buffered']
    #allocation3 [shape = 's32[1]{0}', space=sflag, size = 0x4, scoped, tag = 'scoped memory for tpu_custom_call.1']
    #allocation4 [shape = 'u8[4096]{0}', space=vmem, size = 0x1000, scoped, tag = 'output window, operand 1, single buffered']
    #allocation5 [shape = 's32[1]{0}', space=sflag, size = 0x4, scoped, tag = 'scoped memory for tpu_custom_call.1']
    #allocation6 [shape = 'u8[12288]{0}', space=vmem, size = 0x3000, scoped, tag = 'output window, operand 2, single buffered']
    #allocation7 [shape = 'u8[4096]{0}', space=vmem, size = 0x1000, scoped, tag = 'output window, operand 3, single buffered']
    #allocation8 [shape = 's32[1]{0}', space=sflag, size = 0x4, scoped, tag = 'scoped memory for tpu_custom_call.1']
    %21 = vsyncpa [#allocation3], 0
    %22 = vsyncpa [#allocation5], 0
    %23 = vsyncpa [#allocation8], 0
    // Predicated region
    $region2: #{tpu_custom_call.1} parent=1 // pred_check
      _
    $region3: #{tpu_custom_call.1} parent=1 // pred_check_branch
      %25 = sbr.rel (0) target = $region5
    $region4: #{tpu_custom_call.1} parent=1 // pred_region
      _
    $region5: #{tpu_custom_call.1} parent=1 // pred_fallthru
      _
    // Predicated region
    $region6: #{tpu_custom_call.1} parent=1 // pred_check
      _
    $region7: #{tpu_custom_call.1} parent=1 // pred_check_branch
      %27 = sbr.rel (0) target = $region9
    $region8: #{tpu_custom_call.1} parent=1 // pred_region
      _
    $region9: #{tpu_custom_call.1} parent=1 // pred_fallthru
      _
    // Predicated region
    $region10: #{tpu_custom_call.1} parent=1 // pred_check
      _
    $region11: #{tpu_custom_call.1} parent=1 // pred_check_branch
      %29 = sbr.rel (0) target = $region13
    $region12: #{tpu_custom_call.1} parent=1 // pred_region
      _
    $region13: #{tpu_custom_call.1} parent=1 // pred_fallthru
      _
    // Predicated region
    $region14: #{tpu_custom_call.1} parent=1 // pred_check
      _
    $region15: #{tpu_custom_call.1} parent=1 // pred_check_branch
      %31 = sbr.rel (0) target = $region17
    $region16: #{tpu_custom_call.1} parent=1 // pred_region
      _
    $region17: #{tpu_custom_call.1} parent=1 // pred_fallthru
      _
    // Predicated region
    $region18: #{tpu_custom_call.1} parent=1 // pred_check
      _
    $region19: #{tpu_custom_call.1} parent=1 // pred_check_branch
      %33 = sbr.rel (0) target = $region21
    $region20: #{tpu_custom_call.1} parent=1 // pred_region
      _
    $region21: #{tpu_custom_call.1} parent=1 // pred_fallthru
      _
    // Predicated region
    $region22: #{tpu_custom_call.1} parent=1 // pred_check
      _
    $region23: #{tpu_custom_call.1} parent=1 // pred_check_branch
      %35 = sbr.rel (0) target = $region25
    $region24: #{tpu_custom_call.1} parent=1 // pred_region
      _
    $region25: #{tpu_custom_call.1} parent=1 // pred_fallthru
      _
    // Predicated region
    $region26: #{tpu_custom_call.1} parent=1 // pred_check
      _
    $region27: #{tpu_custom_call.1} parent=1 // pred_check_branch
      %37 = sbr.rel (0) target = $region29
    $region28: #{tpu_custom_call.1} parent=1 // pred_region
      _
    $region29: #{tpu_custom_call.1} parent=1 // pred_fallthru
      _
    // Predicated region
    $region30: #{tpu_custom_call.1} parent=1 // pred_check
      _
    $region31: #{tpu_custom_call.1} parent=1 // pred_check_branch
      %39 = sbr.rel (0) target = $region33
    $region32: #{tpu_custom_call.1} parent=1 // pred_region
      _
    $region33: #{tpu_custom_call.1} parent=1 // pred_fallthru
      _
    // Predicated region
    $region34: #{tpu_custom_call.1} parent=1 // pred_check
      _
    $region35: #{tpu_custom_call.1} parent=1 // pred_check_branch
      %41 = sbr.rel (0) target = $region37
    $region36: #{tpu_custom_call.1} parent=1 // pred_region
      _
    $region37: #{tpu_custom_call.1} parent=1 // pred_fallthru
      _
    // Predicated region
    $region38: #{tpu_custom_call.1} parent=1 // pred_check
      _
    $region39: #{tpu_custom_call.1} parent=1 // pred_check_branch
      %43 = sbr.rel (0) target = $region41
    $region40: #{tpu_custom_call.1} parent=1 // pred_region
      _
    $region41: #{tpu_custom_call.1} parent=1 // pred_fallthru
      _
    // Predicated region
    $region42: #{tpu_custom_call.1} parent=1 // pred_check
      _
    $region43: #{tpu_custom_call.1} parent=1 // pred_check_branch
      %45 = sbr.rel (0) target = $region45
    $region44: #{tpu_custom_call.1} parent=1 // pred_region
      _
    $region45: #{tpu_custom_call.1} parent=1 // pred_fallthru
      _
    // Predicated region
    $region46: #{tpu_custom_call.1} parent=1 // pred_check
      _
    $region47: #{tpu_custom_call.1} parent=1 // pred_check_branch
      %47 = sbr.rel (0) target = $region49
    $region48: #{tpu_custom_call.1} parent=1 // pred_region
      _
    $region49: #{tpu_custom_call.1} parent=1 // pred_fallthru
      _
    %v49 = vld [vmem:[%s0] sm:$0xff]
    %v50 = vld [vmem:[%s0 + $0x8] sm:$0xff]
    %v51 = vpack.c.bf16 %v49, %v49
    %v52 = vpack.c.bf16 %v50, %v50
    %v53 = vld [vmem:[%s1] sm:$0xf]
    %v54 = vld [vmem:[%s1 + $0x4] sm:$0xf]
    %v55 = vld [vmem:[%s1 + $0x8] sm:$0xf]
    %v56 = vld [vmem:[%s1 + $0xc] sm:$0xf]
    %v57 = vld [vmem:[%s1 + $0x10] sm:$0xf]
    %v58 = vld [vmem:[%s1 + $0x14] sm:$0xf]
    %v59 = vld [vmem:[%s1 + $0x18] sm:$0xf]
    %v60 = vld [vmem:[%s1 + $0x1c] sm:$0xf]
    %v61 = vld [vmem:[%s1 + $0x20] sm:$0xf]
    %v62 = vld [vmem:[%s1 + $0x24] sm:$0xf]
    %v63 = vld [vmem:[%s1 + $0x28] sm:$0xf]
    %v64 = vld [vmem:[%s1 + $0x2c] sm:$0xf]
    %v65 = vld [vmem:[%s1 + $0x30] sm:$0xf]
    %v66 = vld [vmem:[%s1 + $0x34] sm:$0xf]
    %v67 = vld [vmem:[%s1 + $0x38] sm:$0xf]
    %v68 = vld [vmem:[%s1 + $0x3c] sm:$0xf]
    %v69 = vld [vmem:[%s1 + $0x40] sm:$0xf]
    %v70 = vld [vmem:[%s1 + $0x44] sm:$0xf]
    %v71 = vld [vmem:[%s1 + $0x48] sm:$0xf]
    %v72 = vld [vmem:[%s1 + $0x4c] sm:$0xf]
    %v73 = vld [vmem:[%s1 + $0x50] sm:$0xf]
    %v74 = vld [vmem:[%s1 + $0x54] sm:$0xf]
    %v75 = vld [vmem:[%s1 + $0x58] sm:$0xf]
    %v76 = vld [vmem:[%s1 + $0x5c] sm:$0xf]
    %v77 = vld [vmem:[%s1 + $0x60] sm:$0xf]
    %v78 = vld [vmem:[%s1 + $0x64] sm:$0xf]
    %v79 = vld [vmem:[%s1 + $0x68] sm:$0xf]
    %v80 = vld [vmem:[%s1 + $0x6c] sm:$0xf]
    %v81 = vld [vmem:[%s1 + $0x70] sm:$0xf]
    %v82 = vld [vmem:[%s1 + $0x74] sm:$0xf]
    %v83 = vld [vmem:[%s1 + $0x78] sm:$0xf]
    %v84 = vld [vmem:[%s1 + $0x7c] sm:$0xf]
    %v85 = vld [vmem:[%s2] sm:$0x1]
    %v87 = vlaneseq
    %v88 = vshrl.u32 %v87, 7
    %v89 = vsub.s32 0, %v88
    %v90 = vrot.slane %v85, %v89
    %v124 = vunpack.c.l.b16 %v53
    %v125 = vunpack.c.l.b16 %v54
    %v126 = vunpack.c.l.b16 %v55
    %v127 = vunpack.c.l.b16 %v56
    %v128 = vunpack.c.l.b16 %v57
    %v129 = vunpack.c.l.b16 %v58
    %v130 = vunpack.c.l.b16 %v59
    %v131 = vunpack.c.l.b16 %v60
    %v132 = vunpack.c.l.b16 %v61
    %v133 = vunpack.c.l.b16 %v62
    %v134 = vunpack.c.l.b16 %v63
    %v135 = vunpack.c.l.b16 %v64
    %v136 = vunpack.c.l.b16 %v65
    %v137 = vunpack.c.l.b16 %v66
    %v138 = vunpack.c.l.b16 %v67
    %v139 = vunpack.c.l.b16 %v68
    %v140 = vunpack.c.l.b16 %v69
    %v141 = vunpack.c.l.b16 %v70
    %v142 = vunpack.c.l.b16 %v71
    %v143 = vunpack.c.l.b16 %v72
    %v144 = vunpack.c.l.b16 %v73
    %v145 = vunpack.c.l.b16 %v74
    %v146 = vunpack.c.l.b16 %v75
    %v147 = vunpack.c.l.b16 %v76
    %v148 = vunpack.c.l.b16 %v77
    %v149 = vunpack.c.l.b16 %v78
    %v150 = vunpack.c.l.b16 %v79
    %v151 = vunpack.c.l.b16 %v80
    %v152 = vunpack.c.l.b16 %v81
    %v153 = vunpack.c.l.b16 %v82
    %v154 = vunpack.c.l.b16 %v83
    %v155 = vunpack.c.l.b16 %v84
    %v156 = vpack.c.b16 %v125, %v124
    %v157 = vpack.c.b16 %v127, %v126
    %v158 = vpack.c.b16 %v129, %v128
    %v159 = vpack.c.b16 %v131, %v130
    %v160 = vpack.c.b16 %v133, %v132
    %v161 = vpack.c.b16 %v135, %v134
    %v162 = vpack.c.b16 %v137, %v136
    %v163 = vpack.c.b16 %v139, %v138
    %v164 = vpack.c.b16 %v141, %v140
    %v165 = vpack.c.b16 %v143, %v142
    %v166 = vpack.c.b16 %v145, %v144
    %v167 = vpack.c.b16 %v147, %v146
    %v168 = vpack.c.b16 %v149, %v148
    %v169 = vpack.c.b16 %v151, %v150
    %v170 = vpack.c.b16 %v153, %v152
    %v171 = vpack.c.b16 %v155, %v154
    %188 = vmatprep.subr.bf16.mxu0 0
    %189 = vmatpush1.bf16.msra.mxu0 %v156
    %190 = vmatprep.subr.bf16.mxu0 0
    %191 = vmatpush1.bf16.msra.mxu0 %v157
    %192 = vmatprep.subr.bf16.mxu0 0
    %193 = vmatpush1.bf16.msra.mxu0 %v158
    %194 = vmatprep.subr.bf16.mxu0 0
    %195 = vmatpush1.bf16.msra.mxu0 %v159
    %196 = vmatprep.subr.bf16.mxu0 0
    %197 = vmatpush1.bf16.msra.mxu0 %v160
    %198 = vmatprep.subr.bf16.mxu0 0
    %199 = vmatpush1.bf16.msra.mxu0 %v161
    %200 = vmatprep.subr.bf16.mxu0 0
    %201 = vmatpush1.bf16.msra.mxu0 %v162
    %202 = vmatprep.subr.bf16.mxu0 0
    %203 = vmatpush1.bf16.msra.mxu0 %v163
    %204 = vmatprep.subr.bf16.mxu0 0
    %205 = vmatpush1.bf16.msra.mxu0 %v164
    %206 = vmatprep.subr.bf16.mxu0 0
    %207 = vmatpush1.bf16.msra.mxu0 %v165
    %208 = vmatprep.subr.bf16.mxu0 0
    %209 = vmatpush1.bf16.msra.mxu0 %v166
    %210 = vmatprep.subr.bf16.mxu0 0
    %211 = vmatpush1.bf16.msra.mxu0 %v167
    %212 = vmatprep.subr.bf16.mxu0 0
    %213 = vmatpush1.bf16.msra.mxu0 %v168
    %214 = vmatprep.subr.bf16.mxu0 0
    %215 = vmatpush1.bf16.msra.mxu0 %v169
    %216 = vmatprep.subr.bf16.mxu0 0
    %217 = vmatpush1.bf16.msra.mxu0 %v170
    %218 = vmatprep.subr.bf16.mxu0 0
    %219 = vmatpush1.bf16.msra.mxu0 %v171
    %220 = vmatprep.mubr.bf16.mxu0 %v52
    %221 = vmatmul.mubr.bf16.gmra.mrb[0].mxu0 %v51
    %v222 = vpop.f32.mrb[0].mxu0
    %v223 = vadd.f32 %v90, %v222
    %v224 = vpop.f32.mrb[0].mxu0
    %v225 = vpop.f32.mrb[0].mxu0
    %v226 = vpop.f32.mrb[0].mxu0
    %227 = vdwg.mxu0
    %v228 = vtanh.pop %v223
    %v229 = vpack.c.bf16 %v228, %v228
    %v230 = vld [vmem:[%s3] sm:$0xf]
    %v231 = vld [vmem:[%s3 + $0x4] sm:$0xf]
    %v232 = vld [vmem:[%s3 + $0x8] sm:$0xf]
    %v233 = vld [vmem:[%s3 + $0xc] sm:$0xf]
    %v234 = vld [vmem:[%s3 + $0x10] sm:$0xf]
    %v235 = vld [vmem:[%s3 + $0x14] sm:$0xf]
    %v236 = vld [vmem:[%s3 + $0x18] sm:$0xf]
    %v237 = vld [vmem:[%s3 + $0x1c] sm:$0xf]
    %v238 = vld [vmem:[%s4] sm:$0x1]
    %v240 = vlaneseq
    %v241 = vshrl.u32 %v240, 7
    %v242 = vsub.s32 0, %v241
    %v243 = vrot.slane %v238, %v242
    %v253 = vunpack.c.l.b16 %v230
    %v254 = vunpack.c.l.b16 %v231
    %v255 = vunpack.c.l.b16 %v232
    %v256 = vunpack.c.l.b16 %v233
    %v257 = vunpack.c.l.b16 %v234
    %v258 = vunpack.c.l.b16 %v235
    %v259 = vunpack.c.l.b16 %v236
    %v260 = vunpack.c.l.b16 %v237
    %v261 = vpack.c.b16 %v254, %v253
    %v262 = vpack.c.b16 %v256, %v255
    %v263 = vpack.c.b16 %v258, %v257
    %v264 = vpack.c.b16 %v260, %v259
    %vm269 = vcmask 523264
    %v271 = vsel %vm269, %v229, 0
    %273 = vmatprep.subr.bf16.mxu0 0
    %274 = vmatpush1.bf16.msra.mxu0 %v261
    %275 = vmatprep.subr.bf16.mxu0 0
    %276 = vmatpush1.bf16.msra.mxu0 %v262
    %277 = vmatprep.subr.bf16.mxu0 0
    %278 = vmatpush1.bf16.msra.mxu0 %v263
    %279 = vmatprep.subr.bf16.mxu0 0
    %280 = vmatpush1.bf16.msra.mxu0 %v264
    %281 = vmatprep.subr.bf16.mxu0 0
    %282 = vmatpush1.bf16.msra.mxu0 0
    %283 = vmatprep.subr.bf16.mxu0 0
    %284 = vmatpush1.bf16.msra.mxu0 0
    %285 = vmatprep.subr.bf16.mxu0 0
    %286 = vmatpush1.bf16.msra.mxu0 0
    %287 = vmatprep.subr.bf16.mxu0 0
    %288 = vmatpush1.bf16.msra.mxu0 0
    %289 = vmatprep.subr.bf16.mxu0 0
    %290 = vmatpush1.bf16.msra.mxu0 0
    %291 = vmatprep.subr.bf16.mxu0 0
    %292 = vmatpush1.bf16.msra.mxu0 0
    %293 = vmatprep.subr.bf16.mxu0 0
    %294 = vmatpush1.bf16.msra.mxu0 0
    %295 = vmatprep.subr.bf16.mxu0 0
    %296 = vmatpush1.bf16.msra.mxu0 0
    %297 = vmatprep.subr.bf16.mxu0 0
    %298 = vmatpush1.bf16.msra.mxu0 0
    %299 = vmatprep.subr.bf16.mxu0 0
    %300 = vmatpush1.bf16.msra.mxu0 0
    %301 = vmatprep.subr.bf16.mxu0 0
    %302 = vmatpush1.bf16.msra.mxu0 0
    %303 = vmatprep.subr.bf16.mxu0 0
    %304 = vmatpush1.bf16.msra.mxu0 0
    %305 = vmatprep.mubr.bf16.mxu0 0
    %306 = vmatmul.mubr.bf16.gmra.mrb[0].mxu0 %v271
    %v307 = vpop.f32.mrb[0].mxu0
    %v308 = vadd.f32 %v243, %v307
    %v309 = vpop.f32.mrb[0].mxu0
    %v310 = vpop.f32.mrb[0].mxu0
    %v311 = vpop.f32.mrb[0].mxu0
    %312 = vdwg.mxu0
    %v313 = vpack.c.bf16 %v308, %v308
    %v314 = vld [vmem:[%s5] sm:$0xf]
    %v315 = vld [vmem:[%s5 + $0x4] sm:$0xf]
    %v316 = vld [vmem:[%s5 + $0x8] sm:$0xf]
    %v317 = vld [vmem:[%s5 + $0xc] sm:$0xf]
    %v318 = vld [vmem:[%s5 + $0x10] sm:$0xf]
    %v319 = vld [vmem:[%s5 + $0x14] sm:$0xf]
    %v320 = vld [vmem:[%s5 + $0x18] sm:$0xf]
    %v321 = vld [vmem:[%s5 + $0x1c] sm:$0xf]
    %v322 = vld [vmem:[%s6] sm:$0x1]
    %v324 = vlaneseq
    %v325 = vshrl.u32 %v324, 7
    %v326 = vsub.s32 0, %v325
    %v327 = vrot.slane %v322, %v326
    %v337 = vunpack.c.l.b16 %v314
    %v338 = vunpack.c.l.b16 %v315
    %v339 = vunpack.c.l.b16 %v316
    %v340 = vunpack.c.l.b16 %v317
    %v341 = vunpack.c.l.b16 %v318
    %v342 = vunpack.c.l.b16 %v319
    %v343 = vunpack.c.l.b16 %v320
    %v344 = vunpack.c.l.b16 %v321
    %v345 = vpack.c.b16 %v338, %v337
    %v346 = vpack.c.b16 %v340, %v339
    %v347 = vpack.c.b16 %v342, %v341
    %v348 = vpack.c.b16 %v344, %v343
    %v354 = vsel %vm269, %v313, 0
    %356 = vmatprep.subr.bf16.mxu0 0
    %357 = vmatpush1.bf16.msra.mxu0 %v345
    %358 = vmatprep.subr.bf16.mxu0 0
    %359 = vmatpush1.bf16.msra.mxu0 %v346
    %360 = vmatprep.subr.bf16.mxu0 0
    %361 = vmatpush1.bf16.msra.mxu0 %v347
    %362 = vmatprep.subr.bf16.mxu0 0
    %363 = vmatpush1.bf16.msra.mxu0 %v348
    %364 = vmatprep.subr.bf16.mxu0 0
    %365 = vmatpush1.bf16.msra.mxu0 0
    %366 = vmatprep.subr.bf16.mxu0 0
    %367 = vmatpush1.bf16.msra.mxu0 0
    %368 = vmatprep.subr.bf16.mxu0 0
    %369 = vmatpush1.bf16.msra.mxu0 0
    %370 = vmatprep.subr.bf16.mxu0 0
    %371 = vmatpush1.bf16.msra.mxu0 0
    %372 = vmatprep.subr.bf16.mxu0 0
    %373 = vmatpush1.bf16.msra.mxu0 0
    %374 = vmatprep.subr.bf16.mxu0 0
    %375 = vmatpush1.bf16.msra.mxu0 0
    %376 = vmatprep.subr.bf16.mxu0 0
    %377 = vmatpush1.bf16.msra.mxu0 0
    %378 = vmatprep.subr.bf16.mxu0 0
    %379 = vmatpush1.bf16.msra.mxu0 0
    %380 = vmatprep.subr.bf16.mxu0 0
    %381 = vmatpush1.bf16.msra.mxu0 0
    %382 = vmatprep.subr.bf16.mxu0 0
    %383 = vmatpush1.bf16.msra.mxu0 0
    %384 = vmatprep.subr.bf16.mxu0 0
    %385 = vmatpush1.bf16.msra.mxu0 0
    %386 = vmatprep.subr.bf16.mxu0 0
    %387 = vmatpush1.bf16.msra.mxu0 0
    %388 = vmatprep.mubr.bf16.mxu0 0
    %389 = vmatmul.mubr.bf16.gmra.mrb[0].mxu0 %v354
    %v390 = vpop.f32.mrb[0].mxu0
    %v391 = vadd.f32 %v327, %v390
    %v392 = vpop.f32.mrb[0].mxu0
    %v393 = vpop.f32.mrb[0].mxu0
    %v394 = vpop.f32.mrb[0].mxu0
    %395 = vdwg.mxu0
    %vm396 = vcmask 261120
    %397 = vst.msk [vmem:[#allocation2] sm:$0xff] %vm396, %v391
    %399 = vrot.lane.b32.xlu0 %v391, 96
    %v400 = vpop.permute.xlu0 %399
    %402 = vst.msk [vmem:[#allocation4] sm:$0xff] %vm396, %v400
    %v403 = vadd.f32 %v391, 1.0
    %v404 = vmul.f32 %v391, %v391
    %406 = vrot.lane.b32.xlu0 %v404, 32
    %v407 = vpop.permute.xlu0 %406
    %v409 = vsub.f32 %v403, %v407
    %v410 = vmul.f32 %v391, 1.442695
    %v411 = vpow.pop %v410
    %v412 = vsub.f32 %v409, %v411
    %414 = vrot.lane.b32.xlu0 %v412, 96
    %v415 = vpop.permute.xlu0 %414
    %v417 = vsel %vm396, %v415, 0.0
    %418 = vadd.xlane.f32.xlu0 %v417
    %v419 = vpop.xlane.xlu0 %418
    %v420 = vmul.f32 %v419, -0.5
    %v421 = vsel %vm396, %v404, 0.0
    %422 = vadd.xlane.f32.xlu0 %v421
    %v423 = vpop.xlane.xlu0 %422
    %v424 = vrsqrt.pop %v423
    %v425 = vmul.f32 %v423, %v424
    %vm426 = vcmp.eq.f32.partialorder %v423, inf
    %v427 = vsel %vm426, %v423, %v425
    %vm428 = vcmp.eq.f32.partialorder %v423, 0.0
    %v429 = vand.u32 %v423, 2147483648
    %v430 = vsel %vm428, %v429, %v427
    %v431 = vmul.f32 %v391, 0.5
    %v432 = vmul.f32 %v431, 1.442695
    %v433 = vpow.pop %v432
    %v434 = vld [vmem:[%s11] sm:$0xff]
    %v435 = vld [vmem:[%s11 + $0x8] sm:$0xff]
    %v436 = vld [vmem:[%s11 + $0x10] sm:$0xff]
    %438 = vrot.lane.b32.xlu0 %v433, 96
    %v439 = vpop.permute.xlu0 %438
    %v441 = vmul.f32 %v434, %v439
    %v442 = vmul.f32 %v435, %v439
    %v443 = vmul.f32 %v436, %v439
    %v444 = vadd.f32 %v391, %v441
    %v445 = vadd.f32 %v391, %v442
    %v446 = vadd.f32 %v391, %v443
    %447 = vst.msk [vmem:[#allocation6] sm:$0xff] %vm396, %v444
    %448 = vst.msk [vmem:[#allocation6 + $0x8] sm:$0xff] %vm396, %v445
    %449 = vst.msk [vmem:[#allocation6 + $0x10] sm:$0xff] %vm396, %v446
    %v450 = vpack.c.bf16 %v445, %v444
    %v451 = vpack.c.bf16 %v446, %v446
    %v452 = vld [vmem:[%s7] sm:$0xf]
    %v453 = vld [vmem:[%s7 + $0x4] sm:$0xf]
    %v454 = vld [vmem:[%s7 + $0x8] sm:$0xf]
    %v455 = vld [vmem:[%s7 + $0xc] sm:$0xf]
    %v456 = vld [vmem:[%s8] sm:$0x1]
    %v458 = vlaneseq
    %v459 = vshrl.u32 %v458, 7
    %v460 = vsub.s32 0, %v459
    %v461 = vrot.slane %v456, %v460
    %v467 = vunpack.c.l.b16 %v452
    %v468 = vunpack.c.l.b16 %v453
    %v469 = vunpack.c.l.b16 %v454
    %v470 = vunpack.c.l.b16 %v455
    %v471 = vpack.c.b16 %v468, %v467
    %v472 = vpack.c.b16 %v470, %v469
    %v476 = vsel %vm396, %v450, 0
    %v479 = vsel %vm396, %v451, 0
    %481 = vmatprep.subr.bf16.mxu0 0
    %482 = vmatpush1.bf16.msra.mxu0 %v471
    %483 = vmatprep.subr.bf16.mxu0 0
    %484 = vmatpush1.bf16.msra.mxu0 %v472
    %485 = vmatprep.subr.bf16.mxu0 0
    %486 = vmatpush1.bf16.msra.mxu0 0
    %487 = vmatprep.subr.bf16.mxu0 0
    %488 = vmatpush1.bf16.msra.mxu0 0
    %489 = vmatprep.subr.bf16.mxu0 0
    %490 = vmatpush1.bf16.msra.mxu0 0
    %491 = vmatprep.subr.bf16.mxu0 0
    %492 = vmatpush1.bf16.msra.mxu0 0
    %493 = vmatprep.subr.bf16.mxu0 0
    %494 = vmatpush1.bf16.msra.mxu0 0
    %495 = vmatprep.subr.bf16.mxu0 0
    %496 = vmatpush1.bf16.msra.mxu0 0
    %497 = vmatprep.subr.bf16.mxu0 0
    %498 = vmatpush1.bf16.msra.mxu0 0
    %499 = vmatprep.subr.bf16.mxu0 0
    %500 = vmatpush1.bf16.msra.mxu0 0
    %501 = vmatprep.subr.bf16.mxu0 0
    %502 = vmatpush1.bf16.msra.mxu0 0
    %503 = vmatprep.subr.bf16.mxu0 0
    %504 = vmatpush1.bf16.msra.mxu0 0
    %505 = vmatprep.subr.bf16.mxu0 0
    %506 = vmatpush1.bf16.msra.mxu0 0
    %507 = vmatprep.subr.bf16.mxu0 0
    %508 = vmatpush1.bf16.msra.mxu0 0
    %509 = vmatprep.subr.bf16.mxu0 0
    %510 = vmatpush1.bf16.msra.mxu0 0
    %511 = vmatprep.subr.bf16.mxu0 0
    %512 = vmatpush1.bf16.msra.mxu0 0
    %513 = vmatprep.mubr.bf16.mxu0 0
    %514 = vmatmul.mubr.bf16.gmra.mrb[0].mxu0 %v476
    %v515 = vpop.f32.mrb[0].mxu0
    %v516 = vadd.f32 %v461, %v515
    %v517 = vpop.f32.mrb[0].mxu0
    %v518 = vpop.f32.mrb[0].mxu0
    %v519 = vadd.f32 %v461, %v518
    %v520 = vpop.f32.mrb[0].mxu0
    %521 = vmatprep.mubr.bf16.mxu0 0
    %522 = vmatmul.mubr.bf16.gmra.mrb[0].mxu0 %v479
    %v523 = vpop.f32.mrb[0].mxu0
    %v524 = vadd.f32 %v461, %v523
    %v525 = vpop.f32.mrb[0].mxu0
    %v526 = vpop.f32.mrb[0].mxu0
    %v527 = vpop.f32.mrb[0].mxu0
    %528 = vdwg.mxu0
    %v529 = vtanh.pop %v516
    %v530 = vtanh.pop %v519
    %v531 = vtanh.pop %v524
    %v532 = vpack.c.bf16 %v530, %v529
    %v533 = vpack.c.bf16 %v531, %v531
    %v534 = vld [vmem:[%s9] sm:$0xff]
    %v535 = vld [vmem:[%s9 + $0x8] sm:$0xff]
    %v536 = vld [vmem:[%s9 + $0x10] sm:$0xff]
    %v537 = vld [vmem:[%s9 + $0x18] sm:$0xff]
    %v538 = vld [vmem:[%s9 + $0x20] sm:$0xff]
    %v539 = vld [vmem:[%s9 + $0x28] sm:$0xff]
    %v540 = vld [vmem:[%s9 + $0x30] sm:$0xff]
    %v541 = vld [vmem:[%s9 + $0x38] sm:$0xff]
    %v542 = vld [vmem:[%s10] sm:$0x3]
    %v544 = vlaneseq
    %v545 = vshrl.u32 %v544, 7
    %v546 = vsub.s32 0, %v545
    %v547 = vrot.slane %v542, %v546
    %v548 = vlaneseq
    %v549 = vshrl.u32 %v548, 7
    %v550 = vsub.s32 1, %v549
    %v551 = vrot.slane %v542, %v550
    %v562 = vunpack.c.l.b16 %v534
    %v563 = vunpack.c.h.b16 %v534
    %v564 = vunpack.c.l.b16 %v535
    %v565 = vunpack.c.h.b16 %v535
    %v566 = vunpack.c.l.b16 %v536
    %v567 = vunpack.c.h.b16 %v536
    %v568 = vunpack.c.l.b16 %v537
    %v569 = vunpack.c.h.b16 %v537
    %v570 = vunpack.c.l.b16 %v538
    %v571 = vunpack.c.h.b16 %v538
    %v572 = vunpack.c.l.b16 %v539
    %v573 = vunpack.c.h.b16 %v539
    %v574 = vunpack.c.l.b16 %v540
    %v575 = vunpack.c.h.b16 %v540
    %v576 = vunpack.c.l.b16 %v541
    %v577 = vunpack.c.h.b16 %v541
    %v578 = vpack.c.b16 %v564, %v562
    %v579 = vpack.c.b16 %v565, %v563
    %v580 = vpack.c.b16 %v568, %v566
    %v581 = vpack.c.b16 %v569, %v567
    %v582 = vpack.c.b16 %v572, %v570
    %v583 = vpack.c.b16 %v573, %v571
    %v584 = vpack.c.b16 %v576, %v574
    %v585 = vpack.c.b16 %v577, %v575
    %v595 = vsel %vm269, %v532, 0
    %v598 = vsel %vm269, %v533, 0
    %600 = vmatprep.subr.bf16.mxu0 %v579
    %601 = vmatpush1.bf16.msra.mxu0 %v578
    %602 = vmatprep.subr.bf16.mxu0 %v581
    %603 = vmatpush1.bf16.msra.mxu0 %v580
    %604 = vmatprep.subr.bf16.mxu0 %v583
    %605 = vmatpush1.bf16.msra.mxu0 %v582
    %606 = vmatprep.subr.bf16.mxu0 %v585
    %607 = vmatpush1.bf16.msra.mxu0 %v584
    %608 = vmatprep.subr.bf16.mxu0 0
    %609 = vmatpush1.bf16.msra.mxu0 0
    %610 = vmatprep.subr.bf16.mxu0 0
    %611 = vmatpush1.bf16.msra.mxu0 0
    %612 = vmatprep.subr.bf16.mxu0 0
    %613 = vmatpush1.bf16.msra.mxu0 0
    %614 = vmatprep.subr.bf16.mxu0 0
    %615 = vmatpush1.bf16.msra.mxu0 0
    %616 = vmatprep.subr.bf16.mxu0 0
    %617 = vmatpush1.bf16.msra.mxu0 0
    %618 = vmatprep.subr.bf16.mxu0 0
    %619 = vmatpush1.bf16.msra.mxu0 0
    %620 = vmatprep.subr.bf16.mxu0 0
    %621 = vmatpush1.bf16.msra.mxu0 0
    %622 = vmatprep.subr.bf16.mxu0 0
    %623 = vmatpush1.bf16.msra.mxu0 0
    %624 = vmatprep.subr.bf16.mxu0 0
    %625 = vmatpush1.bf16.msra.mxu0 0
    %626 = vmatprep.subr.bf16.mxu0 0
    %627 = vmatpush1.bf16.msra.mxu0 0
    %628 = vmatprep.subr.bf16.mxu0 0
    %629 = vmatpush1.bf16.msra.mxu0 0
    %630 = vmatprep.subr.bf16.mxu0 0
    %631 = vmatpush1.bf16.msra.mxu0 0
    %632 = vmatprep.mubr.bf16.mxu0 0
    %633 = vmatmul.mubr.bf16.gmra.mrb[0].mxu0 %v595
    %v634 = vpop.f32.mrb[0].mxu0
    %v635 = vadd.f32 %v547, %v634
    %v636 = vpop.f32.mrb[0].mxu0
    %v637 = vadd.f32 %v551, %v636
    %v638 = vpop.f32.mrb[0].mxu0
    %v639 = vadd.f32 %v547, %v638
    %v640 = vpop.f32.mrb[0].mxu0
    %v641 = vadd.f32 %v551, %v640
    %642 = vmatprep.mubr.bf16.mxu0 0
    %643 = vmatmul.mubr.bf16.gmra.mrb[0].mxu0 %v598
    %v644 = vpop.f32.mrb[0].mxu0
    %v645 = vadd.f32 %v547, %v644
    %v646 = vpop.f32.mrb[0].mxu0
    %v647 = vadd.f32 %v551, %v646
    %v648 = vpop.f32.mrb[0].mxu0
    %v649 = vpop.f32.mrb[0].mxu0
    %650 = vdwg.mxu0
    %v651 = vmax.f32 %v635, %v637
    %652 = vmax.xlane.f32.xlu0 %v651
    %v653 = vpop.xlane.xlu0 %652
    %v654 = vmax.f32 %v639, %v641
    %655 = vmax.xlane.f32.xlu0 %v654
    %v656 = vpop.xlane.xlu0 %655
    %v657 = vmax.f32 %v645, %v647
    %658 = vmax.xlane.f32.xlu0 %v657
    %v659 = vpop.xlane.xlu0 %658
    %v660 = vsub.f32 %v635, %v653
    %v661 = vsub.f32 %v637, %v653
    %v662 = vsub.f32 %v639, %v656
    %v663 = vsub.f32 %v641, %v656
    %v664 = vsub.f32 %v645, %v659
    %v665 = vsub.f32 %v647, %v659
    %v666 = vmul.f32 %v660, 1.442695
    %v667 = vpow.pop %v666
    %v668 = vmul.f32 %v661, 1.442695
    %v669 = vpow.pop %v668
    %v670 = vmul.f32 %v662, 1.442695
    %v671 = vpow.pop %v670
    %v672 = vmul.f32 %v663, 1.442695
    %v673 = vpow.pop %v672
    %v674 = vmul.f32 %v664, 1.442695
    %v675 = vpow.pop %v674
    %v676 = vmul.f32 %v665, 1.442695
    %v677 = vpow.pop %v676
    %v678 = vadd.f32 %v667, %v669
    %679 = vadd.xlane.f32.xlu0 %v678
    %v680 = vpop.xlane.xlu0 %679
    %v681 = vadd.f32 %v671, %v673
    %682 = vadd.xlane.f32.xlu0 %v681
    %v683 = vpop.xlane.xlu0 %682
    %v684 = vadd.f32 %v675, %v677
    %685 = vadd.xlane.f32.xlu0 %v684
    %v686 = vpop.xlane.xlu0 %685
    %v687 = vlog2.pop %v680
    %v688 = vmul.f32 %v687, 0.6931472
    %v689 = vlog2.pop %v683
    %v690 = vmul.f32 %v689, 0.6931472
    %v691 = vlog2.pop %v686
    %v692 = vmul.f32 %v691, 0.6931472
    %v693 = vadd.f32 %v653, %v688
    %v694 = vadd.f32 %v656, %v690
    %v695 = vadd.f32 %v659, %v692
    %v696 = vadd.f32 %v49, %v50
    %697 = vadd.xlane.f32.xlu0 %v696
    %v698 = vpop.xlane.xlu0 %697
    %v699 = vmul.f32 %v635, %v49
    %v700 = vmul.f32 %v637, %v50
    %v701 = vmul.f32 %v639, %v49
    %v702 = vmul.f32 %v641, %v50
    %v703 = vmul.f32 %v645, %v49
    %v704 = vmul.f32 %v647, %v50
    %v705 = vadd.f32 %v699, %v700
    %706 = vadd.xlane.f32.xlu0 %v705
    %v707 = vpop.xlane.xlu0 %706
    %v708 = vadd.f32 %v701, %v702
    %709 = vadd.xlane.f32.xlu0 %v708
    %v710 = vpop.xlane.xlu0 %709
    %v711 = vadd.f32 %v703, %v704
    %712 = vadd.xlane.f32.xlu0 %v711
    %v713 = vpop.xlane.xlu0 %712
    %v714 = vmul.f32 %v693, %v698
    %v715 = vmul.f32 %v694, %v698
    %v716 = vmul.f32 %v695, %v698
    %v717 = vsub.f32 %v707, %v714
    %v718 = vsub.f32 %v710, %v715
    %v719 = vsub.f32 %v713, %v716
    %v720 = vadd.f32 %v717, %v718
    %v721 = vadd.f32 %v720, %v719
    %v722 = vmul.f32 %v721, -0.33333334
    %v723 = vlaneseq
    %v724 = vand.u32 %v723, 127
    %vm725 = vcmp.eq.s32.totalorder %v724, 0
    %vm726 = vcmp.eq.s32.totalorder %v724, 1
    %vm727 = vcmp.eq.s32.totalorder %v724, 2
    %v728 = vsel %vm727, %v722, 0.0
    %v729 = vsel %vm726, %v430, %v728
    %v730 = vsel %vm725, %v420, %v729
    %731 = vst [vmem:[#allocation7] sm:$0xff] %v730
    // Predicated region
    $region50: #{tpu_custom_call.1} parent=1 // pred_check
      _
    $region51: #{tpu_custom_call.1} parent=1 // pred_check_branch
      %733 = sbr.rel (0) target = $region53
    $region52: #{tpu_custom_call.1} parent=1 // pred_region
      %s735 = ssub.s32 128, 128
      %736 = vsyncadd [#allocation3], %s735
      %s738 = sshll.u32 [#allocation2], 4
      %s739 = int_to_ptr.vmem [resolvable:$true] %s738
      %741 = dma.vmem_to_hbm [thread:$0]  %s739, 128, %s12, [#allocation3]
    $region53: #{tpu_custom_call.1} parent=1 // pred_fallthru
      _
    // Predicated region
    $region54: #{tpu_custom_call.1} parent=1 // pred_check
      _
    $region55: #{tpu_custom_call.1} parent=1 // pred_check_branch
      %743 = sbr.rel (0) target = $region57
    $region56: #{tpu_custom_call.1} parent=1 // pred_region
      %s745 = ssub.s32 128, 128
      %746 = vsyncadd [#allocation5], %s745
      %s748 = sshll.u32 [#allocation4], 4
      %s749 = int_to_ptr.vmem [resolvable:$true] %s748
      %751 = dma.vmem_to_hbm [thread:$0]  %s749, 128, %s13, [#allocation5]
    $region57: #{tpu_custom_call.1} parent=1 // pred_fallthru
      _
    // Predicated region
    $region58: #{tpu_custom_call.1} parent=1 // pred_check
      _
    $region59: #{tpu_custom_call.1} parent=1 // pred_check_branch
      %753 = sbr.rel (0) target = $region61
    $region60: #{tpu_custom_call.1} parent=1 // pred_region
      %s755 = ssub.s32 384, 384
      %756 = vsyncadd [#allocation5], %s755
      %s757 = sshll.u32 [#allocation6], 4
      %s758 = int_to_ptr.vmem [resolvable:$true] %s757
      %763 = dma.vmem_to_hbm [thread:$0]  %s758, 384, %s14, [#allocation5], 128, 128, 8
    $region61: #{tpu_custom_call.1} parent=1 // pred_fallthru
      _
    // Predicated region
    $region62: #{tpu_custom_call.1} parent=1 // pred_check
      _
    $region63: #{tpu_custom_call.1} parent=1 // pred_check_branch
      %765 = sbr.rel (0) target = $region65
    $region64: #{tpu_custom_call.1} parent=1 // pred_region
      %s767 = ssub.s32 128, 128
      %768 = vsyncadd [#allocation8], %s767
      %s770 = sshll.u32 [#allocation7], 4
      %s771 = int_to_ptr.vmem [resolvable:$true] %s770
      %773 = dma.vmem_to_hbm [thread:$0]  %s771, 128, %s15, [#allocation8]
    $region65: #{tpu_custom_call.1} parent=1 // pred_fallthru
      _
    // Predicated region
    $region66: #{tpu_custom_call.1} parent=1 // pred_check
      _
    $region67: #{tpu_custom_call.1} parent=1 // pred_check_branch
      %775 = sbr.rel (0) target = $region69
    $region68: #{tpu_custom_call.1} parent=1 // pred_region
      %776 = dma.done [#allocation3], 128
    $region69: #{tpu_custom_call.1} parent=1 // pred_fallthru
      _
    // Predicated region
    $region70: #{tpu_custom_call.1} parent=1 // pred_check
      _
    $region71: #{tpu_custom_call.1} parent=1 // pred_check_branch
      %778 = sbr.rel (0) target = $region73
    $region72: #{tpu_custom_call.1} parent=1 // pred_region
      %779 = dma.done [#allocation5], 128
    $region73: #{tpu_custom_call.1} parent=1 // pred_fallthru
      _
    // Predicated region
    $region74: #{tpu_custom_call.1} parent=1 // pred_check
      _
    $region75: #{tpu_custom_call.1} parent=1 // pred_check_branch
      %781 = sbr.rel (0) target = $region77
    $region76: #{tpu_custom_call.1} parent=1 // pred_region
      %782 = dma.done [#allocation5], 384
    $region77: #{tpu_custom_call.1} parent=1 // pred_fallthru
      _
    // Predicated region
    $region78: #{tpu_custom_call.1} parent=1 // pred_check
      _
    $region79: #{tpu_custom_call.1} parent=1 // pred_check_branch
      %784 = sbr.rel (0) target = $region81
    $region80: #{tpu_custom_call.1} parent=1 // pred_region
      %785 = dma.done [#allocation8], 128
    $region81: #{tpu_custom_call.1} parent=1 // pred_fallthru
      _
    %786 = vsyncpa [#allocation3], 1
    %787 = vsyncpa [#allocation5], 1
    %788 = vsyncpa [#allocation8], 1

</llo_original>
